<compile_context>
chip_gen: v5e
topology: v5e:2x2
jax: 0.10.0
libtpu: 0.0.40
codegen_flags: <defaults>
</compile_context>

<pallas_src>
import math

import jax
import jax.numpy as jnp
from jax import lax
from jax.experimental import pallas as pl
from jax.experimental.pallas import tpu as pltpu


def _round_up(x, m):
    return ((x + m - 1) // m) * m


def _buf_bytes(shape, dtype):
    """VMEM footprint of one buffer, including lane/sublane padding."""
    dt = jnp.dtype(dtype)
    rows = int(shape[0]) if len(shape) > 1 else 1
    cols = int(shape[-1])
    sublane = 8 * max(1, 4 // dt.itemsize)        # 8 rows/vreg (f32), 16 (bf16)
    return (_round_up(max(rows, 1), sublane)
            * _round_up(max(cols, 1), 128) * dt.itemsize)


def _vmem_cap_bytes():
    """Usable per-core VMEM cap (generation-gated: ~54 MiB v7x, ~108 MiB v5e/v6e)."""
    try:
        phys = int(pltpu.get_tpu_info().vmem_capacity_bytes)
    except Exception:
        phys = 64 << 20            # conservative: assume v7x-sized VMEM
    return max(int(phys * 0.85), 16 << 20)


def _make_reward_kernel(feat_sizes):
    n_parts = len(feat_sizes)

    def kernel(*refs):
        xs = refs[:n_parts]
        (w1_ref, b1_ref, w2_ref, b2_ref, w3_ref, b3_ref,
         o_ref, cat_ref) = refs[n_parts:]

        # Fused concat: copy each state component into the scratch at its
        # static lane offset (VPU/vst work that co-issues with DMA and MXU).
        off = 0
        for k in range(n_parts):
            f = feat_sizes[k]
            cat_ref[:, off:off + f] = xs[k][...].astype(cat_ref.dtype)
            off += f

        # Layer 1: a single MXU pass over the fused-concat tile (f32 accumulate).
        h1 = jnp.dot(cat_ref[...], w1_ref[...], preferred_element_type=jnp.float32)
        h1 = jnp.maximum(h1 + b1_ref[...], 0.0)

        # Layer 2.
        h2 = jnp.dot(h1.astype(w2_ref.dtype), w2_ref[...],
                     preferred_element_type=jnp.float32)
        h2 = jnp.maximum(h2 + b2_ref[...], 0.0)

        # Head (out_features = 1), produced lane-dense: contract the hidden dim
        # of w3 (1, Hp) against the hidden dim of h2 (tb, Hp) -> (1, tb), so the
        # (1, tb) output block is written with dense, unmasked lane stores.
        out_row = lax.dot_general(
            w3_ref[...], h2.astype(w3_ref.dtype),
            dimension_numbers=(((1,), (1,)), ((), ())),
            preferred_element_type=jnp.float32)
        o_ref[...] = (out_row + b3_ref[...]).astype(o_ref.dtype)

    return kernel


def _reward_mlp_call(parts, params, *, compute_dtype, block_b, single_buffer_weights):
    """parts: list of (B, f_k) f32 arrays (declared key order). Returns (B,) f32."""
    w1, b1, w2, b2, w3r, b3 = params            # hidden-padded, f32
    feat_sizes = tuple(int(p.shape[1]) for p in parts)
    input_size = sum(feat_sizes)
    B = int(parts[0].shape[0])
    Hp = int(w2.shape[0])

    cd = jnp.dtype(compute_dtype)
    # Weights are tiny: host-side cast is free.  Activations are NOT cast in
    # the wrapper — they stream as f32 and are cast in-kernel (no extra HBM pass).
    weights = (w1.astype(cd), b1, w2.astype(cd), b2, w3r.astype(cd), b3)

    cap = _vmem_cap_bytes()
    block_b = max(128, _round_up(int(block_b), 128))

    def vmem_need(tb):
        need = 2 * sum(_buf_bytes((tb, f), jnp.float32) for f in feat_sizes)  # streamed parts
        need += 2 * _buf_bytes((1, tb), jnp.float32)                          # output row
        need += (1 if single_buffer_weights else 2) * sum(
            _buf_bytes(a.shape, a.dtype) for a in weights)                    # resident weights
        need += _buf_bytes((tb, input_size), cd)                              # concat scratch
        need += 4 * _buf_bytes((tb, Hp), jnp.float32)                         # h1/h2 (+casts)
        return need + (2 << 20)                                               # headroom

    if B >= 256:
        # Target >=2 grid steps so ("parallel",) can shard across both v7x
        # TensorCores; shrink the tile (multiple of 128) if VMEM doesn't fit.
        tb = min(block_b, _round_up(pl.cdiv(B, 2), 128))
        while tb > 128 and vmem_need(tb) > cap:
            tb = max(128, _round_up(tb // 2, 128))
    else:
        tb = B            # single full-dim tile (always a legal block shape)
    grid_n = pl.cdiv(B, tb)

    # TODO(synk): for very large Hp where a resident W2 no longer fits VMEM
    # (v7x hits this first), add a K-tiled "arbitrary" grid axis over W2 with
    # an f32 accumulator instead of shrinking tb further.

    weight_kwargs = dict(pipeline_mode=pl.Buffered(1)) if single_buffer_weights else {}

    in_specs = []
    for f in feat_sizes:                                       # streamed per batch tile
        in_specs.append(pl.BlockSpec((tb, f), lambda i: (i, 0)))
    for a in weights:                                          # VMEM-resident, fetched once
        in_specs.append(pl.BlockSpec(a.shape, lambda i: (0, 0), **weight_kwargs))
    out_specs = pl.BlockSpec((1, tb), lambda i: (0, i))        # lane-dense output row

    weight_hbm_bytes = sum(int(a.size) * a.dtype.itemsize for a in weights)
    cost = pl.CostEstimate(
        flops=2 * B * (input_size * Hp + Hp * Hp + Hp),
        transcendentals=0,
        bytes_accessed=B * (input_size + 1) * 4 + weight_hbm_bytes,
    )

    out = pl.pallas_call(
        _make_reward_kernel(feat_sizes),
        out_shape=jax.ShapeDtypeStruct((1, grid_n * tb), jnp.float32),
        grid=(grid_n,),
        in_specs=in_specs,
        out_specs=out_specs,
        scratch_shapes=[pltpu.VMEM((tb, input_size), cd)],
        compiler_params=pltpu.CompilerParams(
            dimension_semantics=("parallel",),
            vmem_limit_bytes=int(cap),
        ),
        cost_estimate=cost,
    )(*parts, *weights)
    # Lane-padded tail rows (last partial tile) are discarded here.
    return out.reshape(-1)[:B]


class RewardModelPallas:
    """JAX/Pallas port of lab.models.dynamics_models.reward.RewardModel."""

    def __init__(self, state_size, hidden_size=None, key=None,
                 compute_dtype=jnp.float32, block_b=1024):
        self.state_size = dict(state_size)            # preserves key order
        self.input_size = sum(state_size.values())
        if hidden_size is None:
            hidden_size = self.input_size
        self.hidden_size = hidden_size
        # Zero-pad the hidden dim to lane/MXU granularity: numerically identical
        # (padded units stay exactly 0 through every layer) but keeps all
        # intermediates lane-dense and MXU tiles filled.
        self.hidden_padded = _round_up(hidden_size, 128)
        self.compute_dtype = compute_dtype
        self.block_b = block_b

        if key is None:
            key = jax.random.PRNGKey(0)
        ks = jax.random.split(key, 6)

        def linear_init(kw, kb, fan_in, fan_out):
            # torch.nn.Linear default: U(-1/sqrt(fan_in), 1/sqrt(fan_in)).
            bound = 1.0 / math.sqrt(fan_in)
            w = jax.random.uniform(kw, (fan_in, fan_out), jnp.float32, -bound, bound)
            b = jax.random.uniform(kb, (1, fan_out), jnp.float32, -bound, bound)
            return w, b

        H, Hp = hidden_size, self.hidden_padded
        w1, b1 = linear_init(ks[0], ks[1], self.input_size, H)
        w2, b2 = linear_init(ks[2], ks[3], H, H)
        w3, b3 = linear_init(ks[4], ks[5], H, 1)
        self._ref_params = (w1, b1, w2, b2, w3, b3)

        pad = Hp - H
        self.params = (
            jnp.pad(w1, ((0, 0), (0, pad))),           # (input_size, Hp)
            jnp.pad(b1, ((0, 0), (0, pad))),           # (1, Hp), stays f32
            jnp.pad(w2, ((0, pad), (0, pad))),         # (Hp, Hp)
            jnp.pad(b2, ((0, 0), (0, pad))),           # (1, Hp), stays f32
            jnp.pad(w3.T, ((0, 0), (0, pad))),         # (1, Hp) row
            b3,                                        # (1, 1), stays f32
        )

    def __call__(self, state, compute_dtype=None, block_b=None):
        cd = self.compute_dtype if compute_dtype is None else compute_dtype
        bb = self.block_b if block_b is None else block_b
        # Flattening each component to (-1, f_k) is equivalent to
        # cat(dim=-1).view(-1, input_size): leading dims match across keys.
        parts = []
        for k in self.state_size.keys():
            p = state[k].reshape(-1, self.state_size[k])
            parts.append(p if p.dtype == jnp.float32 else p.astype(jnp.float32))
        try:
            return _reward_mlp_call(parts, self.params, compute_dtype=cd,
                                    block_b=bb, single_buffer_weights=True)
        except Exception:
            # Fallback if pl.Buffered(1) (single-buffered resident weights) is
            # rejected by the installed JAX: default double buffering.
            return _reward_mlp_call(parts, self.params, compute_dtype=cd,
                                    block_b=bb, single_buffer_weights=False)

    def reference(self, state):
        """Pure-JAX reference (unpadded weights) for correctness checking."""
        w1, b1, w2, b2, w3, b3 = self._ref_params
        inp = jnp.concatenate([state[k] for k in self.state_size.keys()], axis=-1)
        x = inp.reshape(-1, self.input_size).astype(jnp.float32)
        h1 = jnp.maximum(x @ w1 + b1, 0.0)
        h2 = jnp.maximum(h1 @ w2 + b2, 0.0)
        return (h2 @ w3 + b3).reshape(-1)


if __name__ == "__main__":
    key = jax.random.PRNGKey(0)
    (k_model, k_obs, k_vel, k_goal,
     k2_obs, k2_vel, k2_goal) = jax.random.split(key, 7)

    # Dict of state tensors concatenated on the last dim, per the module.
    state_size = {"observation": 12, "velocity": 4, "goal": 16}   # input_size = 32
    model = RewardModelPallas(state_size, hidden_size=32, key=k_model)

    # 1) small single-tile path (grid=(1,)), strict f32 check.
    batch, seq = 2, 8                                             # B = 16 after flatten
    state = {
        "observation": jax.random.normal(k_obs, (batch, seq, 12), jnp.float32),
        "velocity":    jax.random.normal(k_vel, (batch, seq, 4), jnp.float32),
        "goal":        jax.random.normal(k_goal, (batch, seq, 16), jnp.float32),
    }
    ref = model.reference(state)
    out = jax.block_until_ready(model(state))
    assert out.shape == (batch * seq,), out.shape
    assert jnp.allclose(out, ref, atol=1e-4, rtol=1e-4), "f32 single-tile mismatch"

    # 2) larger batch: exercises the lane-dense tiled path (tb=256, grid=(2,))
    #    and the megacore-friendly batch split.
    batch2, seq2 = 4, 128                                         # B = 512
    state2 = {
        "observation": jax.random.normal(k2_obs, (batch2, seq2, 12), jnp.float32),
        "velocity":    jax.random.normal(k2_vel, (batch2, seq2, 4), jnp.float32),
        "goal":        jax.random.normal(k2_goal, (batch2, seq2, 16), jnp.float32),
    }
    ref2 = model.reference(state2)
    out2 = jax.block_until_ready(model(state2))
    assert out2.shape == (batch2 * seq2,), out2.shape
    assert jnp.allclose(out2, ref2, atol=1e-4, rtol=1e-4), "f32 tiled mismatch"

    # 3) bf16 MXU operands (cast in-kernel, no wrapper casts), f32 epilogues.
    out_bf16 = jax.block_until_ready(model(state, compute_dtype=jnp.bfloat16))
    assert jnp.allclose(out_bf16, ref, atol=5e-2, rtol=5e-2), "bf16 mismatch"

    print("KERNEL_OK")
</pallas_src>

<mosaic_0001>
module attributes {stable_mosaic.version = 11 : i64} {
  func.func @kernel(%arg0: i32, %arg1: memref<16x12xf32, #tpu.memory_space<vmem>>, %arg2: memref<16x4xf32, #tpu.memory_space<vmem>>, %arg3: memref<16x16xf32, #tpu.memory_space<vmem>>, %arg4: memref<32x128xf32, #tpu.memory_space<vmem>>, %arg5: memref<1x128xf32, #tpu.memory_space<vmem>>, %arg6: memref<128x128xf32, #tpu.memory_space<vmem>>, %arg7: memref<1x128xf32, #tpu.memory_space<vmem>>, %arg8: memref<1x128xf32, #tpu.memory_space<vmem>>, %arg9: memref<1x1xf32, #tpu.memory_space<vmem>>, %arg10: memref<1x16xf32, #tpu.memory_space<vmem>>, %arg11: memref<16x32xf32, #tpu.memory_space<vmem>>) attributes {dimension_semantics = [#tpu.dimension_semantics<parallel>], iteration_bounds = array<i64: 1>, scalar_prefetch = 0 : i64, scratch_operands = 1 : i64, tpu.core_type = #tpu.core_type<tc>, window_params = [{transform_indices = @transform_0, window_bounds = array<i64: 16, 12>}, {transform_indices = @transform_1, window_bounds = array<i64: 16, 4>}, {transform_indices = @transform_2, window_bounds = array<i64: 16, 16>}, {pipeline_mode = #tpu.pipeline_mode<synchronous>, transform_indices = @transform_3, window_bounds = array<i64: 32, 128>}, {pipeline_mode = #tpu.pipeline_mode<synchronous>, transform_indices = @transform_4, window_bounds = array<i64: 1, 128>}, {pipeline_mode = #tpu.pipeline_mode<synchronous>, transform_indices = @transform_5, window_bounds = array<i64: 128, 128>}, {pipeline_mode = #tpu.pipeline_mode<synchronous>, transform_indices = @transform_6, window_bounds = array<i64: 1, 128>}, {pipeline_mode = #tpu.pipeline_mode<synchronous>, transform_indices = @transform_7, window_bounds = array<i64: 1, 128>}, {pipeline_mode = #tpu.pipeline_mode<synchronous>, transform_indices = @transform_8, window_bounds = array<i64: 1, 1>}, {transform_indices = @transform_9, window_bounds = array<i64: 1, 16>}]} {
    %c0 = arith.constant 0 : index
    %c0_0 = arith.constant 0 : index
    %0 = vector.load %arg1[%c0, %c0_0] : memref<16x12xf32, #tpu.memory_space<vmem>>, vector<16x12xf32>
    %c0_1 = arith.constant 0 : index
    %c0_2 = arith.constant 0 : index
    %1 = vector.load %arg11[%c0_1, %c0_2] : memref<16x32xf32, #tpu.memory_space<vmem>>, vector<16x12xf32>
    tpu.vector_store %arg11[%c0_1, %c0_2], %0 {strides = array<i32>} : memref<16x32xf32, #tpu.memory_space<vmem>>, vector<16x12xf32>,
    %c0_3 = arith.constant 0 : index
    %c0_4 = arith.constant 0 : index
    %2 = vector.load %arg2[%c0_3, %c0_4] : memref<16x4xf32, #tpu.memory_space<vmem>>, vector<16x4xf32>
    %c0_5 = arith.constant 0 : index
    %c12 = arith.constant 12 : index
    %3 = vector.load %arg11[%c0_5, %c12] : memref<16x32xf32, #tpu.memory_space<vmem>>, vector<16x4xf32>
    tpu.vector_store %arg11[%c0_5, %c12], %2 {strides = array<i32>} : memref<16x32xf32, #tpu.memory_space<vmem>>, vector<16x4xf32>,
    %c0_6 = arith.constant 0 : index
    %c0_7 = arith.constant 0 : index
    %4 = vector.load %arg3[%c0_6, %c0_7] : memref<16x16xf32, #tpu.memory_space<vmem>>, vector<16x16xf32>
    %c0_8 = arith.constant 0 : index
    %c16 = arith.constant 16 : index
    %5 = vector.load %arg11[%c0_8, %c16] : memref<16x32xf32, #tpu.memory_space<vmem>>, vector<16x16xf32>
    tpu.vector_store %arg11[%c0_8, %c16], %4 {strides = array<i32>} : memref<16x32xf32, #tpu.memory_space<vmem>>, vector<16x16xf32>,
    %c0_9 = arith.constant 0 : index
    %c0_10 = arith.constant 0 : index
    %6 = vector.load %arg11[%c0_9, %c0_10] : memref<16x32xf32, #tpu.memory_space<vmem>>, vector<16x32xf32>
    %c0_11 = arith.constant 0 : index
    %c0_12 = arith.constant 0 : index
    %7 = vector.load %arg4[%c0_11, %c0_12] : memref<32x128xf32, #tpu.memory_space<vmem>>, vector<32x128xf32>
    %cst = arith.constant dense<0.000000e+00> : vector<16x128xf32>
    %8 = tpu.matmul %6, %7, %cst {dimension_numbers = #tpu.dot_dimension_numbers<[1], [0], [0], [1], [0, 0, 1, 1], [], []>} : vector<16x32xf32>, vector<32x128xf32>, vector<16x128xf32> -> vector<16x128xf32>
    %c0_13 = arith.constant 0 : index
    %c0_14 = arith.constant 0 : index
    %9 = vector.load %arg5[%c0_13, %c0_14] : memref<1x128xf32, #tpu.memory_space<vmem>>, vector<1x128xf32>
    %10 = vector.broadcast %9 : vector<1x128xf32> to vector<16x128xf32>
    %11 = arith.addf %8, %10 : vector<16x128xf32>
    %cst_15 = arith.constant 0.000000e+00 : f32
    %12 = vector.broadcast %cst_15 : f32 to vector<16x128xf32>
    %13 = arith.maximumf %11, %12 : vector<16x128xf32>
    %c0_16 = arith.constant 0 : index
    %c0_17 = arith.constant 0 : index
    %14 = vector.load %arg6[%c0_16, %c0_17] : memref<128x128xf32, #tpu.memory_space<vmem>>, vector<128x128xf32>
    %cst_18 = arith.constant dense<0.000000e+00> : vector<16x128xf32>
    %15 = tpu.matmul %13, %14, %cst_18 {dimension_numbers = #tpu.dot_dimension_numbers<[1], [0], [0], [1], [0, 0, 1, 1], [], []>} : vector<16x128xf32>, vector<128x128xf32>, vector<16x128xf32> -> vector<16x128xf32>
    %c0_19 = arith.constant 0 : index
    %c0_20 = arith.constant 0 : index
    %16 = vector.load %arg7[%c0_19, %c0_20] : memref<1x128xf32, #tpu.memory_space<vmem>>, vector<1x128xf32>
    %17 = vector.broadcast %16 : vector<1x128xf32> to vector<16x128xf32>
    %18 = arith.addf %15, %17 : vector<16x128xf32>
    %cst_21 = arith.constant 0.000000e+00 : f32
    %19 = vector.broadcast %cst_21 : f32 to vector<16x128xf32>
    %20 = arith.maximumf %18, %19 : vector<16x128xf32>
    %c0_22 = arith.constant 0 : index
    %c0_23 = arith.constant 0 : index
    %21 = vector.load %arg8[%c0_22, %c0_23] : memref<1x128xf32, #tpu.memory_space<vmem>>, vector<1x128xf32>
    %cst_24 = arith.constant dense<0.000000e+00> : vector<1x16xf32>
    %22 = tpu.matmul %21, %20, %cst_24 {dimension_numbers = #tpu.dot_dimension_numbers<[1], [1], [0], [0], [0, 0, 1, 0], [], []>} : vector<1x128xf32>, vector<16x128xf32>, vector<1x16xf32> -> vector<1x16xf32>
    %c0_25 = arith.constant 0 : index
    %c0_26 = arith.constant 0 : index
    %23 = vector.load %arg9[%c0_25, %c0_26] : memref<1x1xf32, #tpu.memory_space<vmem>>, vector<1x1xf32>
    %24 = vector.broadcast %23 : vector<1x1xf32> to vector<1x16xf32>
    %25 = arith.addf %22, %24 : vector<1x16xf32>
    %c0_27 = arith.constant 0 : index
    %c0_28 = arith.constant 0 : index
    %26 = vector.load %arg10[%c0_27, %c0_28] : memref<1x16xf32, #tpu.memory_space<vmem>>, vector<1x16xf32>
    tpu.vector_store %arg10[%c0_27, %c0_28], %25 {strides = array<i32>} : memref<1x16xf32, #tpu.memory_space<vmem>>, vector<1x16xf32>,
    return
  }
  func.func @transform_0(%arg0: i32) -> (i32, i32) {
    %c0_i32 = arith.constant 0 : i32
    %c0_i32_0 = arith.constant 0 : i32
    return %arg0, %c0_i32 : i32, i32
  }
  func.func @transform_1(%arg0: i32) -> (i32, i32) {
    %c0_i32 = arith.constant 0 : i32
    %c0_i32_0 = arith.constant 0 : i32
    return %arg0, %c0_i32 : i32, i32
  }
  func.func @transform_2(%arg0: i32) -> (i32, i32) {
    %c0_i32 = arith.constant 0 : i32
    %c0_i32_0 = arith.constant 0 : i32
    return %arg0, %c0_i32 : i32, i32
  }
  func.func @transform_3(%arg0: i32) -> (i32, i32) {
    %c0_i32 = arith.constant 0 : i32
    %c0_i32_0 = arith.constant 0 : i32
    %c0_i32_1 = arith.constant 0 : i32
    return %c0_i32, %c0_i32_0 : i32, i32
  }
  func.func @transform_4(%arg0: i32) -> (i32, i32) {
    %c0_i32 = arith.constant 0 : i32
    %c0_i32_0 = arith.constant 0 : i32
    %c0_i32_1 = arith.constant 0 : i32
    return %c0_i32, %c0_i32_0 : i32, i32
  }
  func.func @transform_5(%arg0: i32) -> (i32, i32) {
    %c0_i32 = arith.constant 0 : i32
    %c0_i32_0 = arith.constant 0 : i32
    %c0_i32_1 = arith.constant 0 : i32
    return %c0_i32, %c0_i32_0 : i32, i32
  }
  func.func @transform_6(%arg0: i32) -> (i32, i32) {
    %c0_i32 = arith.constant 0 : i32
    %c0_i32_0 = arith.constant 0 : i32
    %c0_i32_1 = arith.constant 0 : i32
    return %c0_i32, %c0_i32_0 : i32, i32
  }
  func.func @transform_7(%arg0: i32) -> (i32, i32) {
    %c0_i32 = arith.constant 0 : i32
    %c0_i32_0 = arith.constant 0 : i32
    %c0_i32_1 = arith.constant 0 : i32
    return %c0_i32, %c0_i32_0 : i32, i32
  }
  func.func @transform_8(%arg0: i32) -> (i32, i32) {
    %c0_i32 = arith.constant 0 : i32
    %c0_i32_0 = arith.constant 0 : i32
    %c0_i32_1 = arith.constant 0 : i32
    return %c0_i32, %c0_i32_0 : i32, i32
  }
  func.func @transform_9(%arg0: i32) -> (i32, i32) {
    %c0_i32 = arith.constant 0 : i32
    %c0_i32_0 = arith.constant 0 : i32
    return %c0_i32, %arg0 : i32, i32
  }
}

module attributes {stable_mosaic.version = 11 : i64} {
  func.func @kernel(%arg0: i32, %arg1: memref<16x12xf32, #tpu.memory_space<vmem>>, %arg2: memref<16x4xf32, #tpu.memory_space<vmem>>, %arg3: memref<16x16xf32, #tpu.memory_space<vmem>>, %arg4: memref<32x128xf32, #tpu.memory_space<vmem>>, %arg5: memref<1x128xf32, #tpu.memory_space<vmem>>, %arg6: memref<128x128xf32, #tpu.memory_space<vmem>>, %arg7: memref<1x128xf32, #tpu.memory_space<vmem>>, %arg8: memref<1x128xf32, #tpu.memory_space<vmem>>, %arg9: memref<1x1xf32, #tpu.memory_space<vmem>>, %arg10: memref<1x16xf32, #tpu.memory_space<vmem>>, %arg11: memref<16x32xf32, #tpu.memory_space<vmem>>) attributes {dimension_semantics = [#tpu.dimension_semantics<parallel>], iteration_bounds = array<i64: 1>, scalar_prefetch = 0 : i64, scratch_operands = 1 : i64, tpu.core_type = #tpu.core_type<tc>, window_params = [{transform_indices = @transform_0, window_bounds = array<i64: 16, 12>}, {transform_indices = @transform_1, window_bounds = array<i64: 16, 4>}, {transform_indices = @transform_2, window_bounds = array<i64: 16, 16>}, {pipeline_mode = #tpu.pipeline_mode<synchronous>, transform_indices = @transform_3, window_bounds = array<i64: 32, 128>}, {pipeline_mode = #tpu.pipeline_mode<synchronous>, transform_indices = @transform_4, window_bounds = array<i64: 1, 128>}, {pipeline_mode = #tpu.pipeline_mode<synchronous>, transform_indices = @transform_5, window_bounds = array<i64: 128, 128>}, {pipeline_mode = #tpu.pipeline_mode<synchronous>, transform_indices = @transform_6, window_bounds = array<i64: 1, 128>}, {pipeline_mode = #tpu.pipeline_mode<synchronous>, transform_indices = @transform_7, window_bounds = array<i64: 1, 128>}, {pipeline_mode = #tpu.pipeline_mode<synchronous>, transform_indices = @transform_8, window_bounds = array<i64: 1, 1>}, {transform_indices = @transform_9, window_bounds = array<i64: 1, 16>}]} {
    %c0 = arith.constant 0 : index
    %c0_0 = arith.constant 0 : index
    %0 = vector.load %arg1[%c0, %c0_0] : memref<16x12xf32, #tpu.memory_space<vmem>>, vector<16x12xf32>
    %c0_1 = arith.constant 0 : index
    %c0_2 = arith.constant 0 : index
    %1 = vector.load %arg11[%c0_1, %c0_2] : memref<16x32xf32, #tpu.memory_space<vmem>>, vector<16x12xf32>
    tpu.vector_store %arg11[%c0_1, %c0_2], %0 {strides = array<i32>} : memref<16x32xf32, #tpu.memory_space<vmem>>, vector<16x12xf32>,
    %c0_3 = arith.constant 0 : index
    %c0_4 = arith.constant 0 : index
    %2 = vector.load %arg2[%c0_3, %c0_4] : memref<16x4xf32, #tpu.memory_space<vmem>>, vector<16x4xf32>
    %c0_5 = arith.constant 0 : index
    %c12 = arith.constant 12 : index
    %3 = vector.load %arg11[%c0_5, %c12] : memref<16x32xf32, #tpu.memory_space<vmem>>, vector<16x4xf32>
    tpu.vector_store %arg11[%c0_5, %c12], %2 {strides = array<i32>} : memref<16x32xf32, #tpu.memory_space<vmem>>, vector<16x4xf32>,
    %c0_6 = arith.constant 0 : index
    %c0_7 = arith.constant 0 : index
    %4 = vector.load %arg3[%c0_6, %c0_7] : memref<16x16xf32, #tpu.memory_space<vmem>>, vector<16x16xf32>
    %c0_8 = arith.constant 0 : index
    %c16 = arith.constant 16 : index
    %5 = vector.load %arg11[%c0_8, %c16] : memref<16x32xf32, #tpu.memory_space<vmem>>, vector<16x16xf32>
    tpu.vector_store %arg11[%c0_8, %c16], %4 {strides = array<i32>} : memref<16x32xf32, #tpu.memory_space<vmem>>, vector<16x16xf32>,
    %c0_9 = arith.constant 0 : index
    %c0_10 = arith.constant 0 : index
    %6 = vector.load %arg11[%c0_9, %c0_10] : memref<16x32xf32, #tpu.memory_space<vmem>>, vector<16x32xf32>
    %c0_11 = arith.constant 0 : index
    %c0_12 = arith.constant 0 : index
    %7 = vector.load %arg4[%c0_11, %c0_12] : memref<32x128xf32, #tpu.memory_space<vmem>>, vector<32x128xf32>
    %cst = arith.constant dense<0.000000e+00> : vector<16x128xf32>
    %8 = tpu.matmul %6, %7, %cst {dimension_numbers = #tpu.dot_dimension_numbers<[1], [0], [0], [1], [0, 0, 1, 1], [], []>} : vector<16x32xf32>, vector<32x128xf32>, vector<16x128xf32> -> vector<16x128xf32>
    %c0_13 = arith.constant 0 : index
    %c0_14 = arith.constant 0 : index
    %9 = vector.load %arg5[%c0_13, %c0_14] : memref<1x128xf32, #tpu.memory_space<vmem>>, vector<1x128xf32>
    %10 = vector.broadcast %9 : vector<1x128xf32> to vector<16x128xf32>
    %11 = arith.addf %8, %10 : vector<16x128xf32>
    %cst_15 = arith.constant 0.000000e+00 : f32
    %12 = vector.broadcast %cst_15 : f32 to vector<16x128xf32>
    %13 = arith.maximumf %11, %12 : vector<16x128xf32>
    %c0_16 = arith.constant 0 : index
    %c0_17 = arith.constant 0 : index
    %14 = vector.load %arg6[%c0_16, %c0_17] : memref<128x128xf32, #tpu.memory_space<vmem>>, vector<128x128xf32>
    %cst_18 = arith.constant dense<0.000000e+00> : vector<16x128xf32>
    %15 = tpu.matmul %13, %14, %cst_18 {dimension_numbers = #tpu.dot_dimension_numbers<[1], [0], [0], [1], [0, 0, 1, 1], [], []>} : vector<16x128xf32>, vector<128x128xf32>, vector<16x128xf32> -> vector<16x128xf32>
    %c0_19 = arith.constant 0 : index
    %c0_20 = arith.constant 0 : index
    %16 = vector.load %arg7[%c0_19, %c0_20] : memref<1x128xf32, #tpu.memory_space<vmem>>, vector<1x128xf32>
    %17 = vector.broadcast %16 : vector<1x128xf32> to vector<16x128xf32>
    %18 = arith.addf %15, %17 : vector<16x128xf32>
    %cst_21 = arith.constant 0.000000e+00 : f32
    %19 = vector.broadcast %cst_21 : f32 to vector<16x128xf32>
    %20 = arith.maximumf %18, %19 : vector<16x128xf32>
    %c0_22 = arith.constant 0 : index
    %c0_23 = arith.constant 0 : index
    %21 = vector.load %arg8[%c0_22, %c0_23] : memref<1x128xf32, #tpu.memory_space<vmem>>, vector<1x128xf32>
    %cst_24 = arith.constant dense<0.000000e+00> : vector<1x16xf32>
    %22 = tpu.matmul %21, %20, %cst_24 {dimension_numbers = #tpu.dot_dimension_numbers<[1], [1], [0], [0], [0, 0, 1, 0], [], []>} : vector<1x128xf32>, vector<16x128xf32>, vector<1x16xf32> -> vector<1x16xf32>
    %c0_25 = arith.constant 0 : index
    %c0_26 = arith.constant 0 : index
    %23 = vector.load %arg9[%c0_25, %c0_26] : memref<1x1xf32, #tpu.memory_space<vmem>>, vector<1x1xf32>
    %24 = vector.broadcast %23 : vector<1x1xf32> to vector<1x16xf32>
    %25 = arith.addf %22, %24 : vector<1x16xf32>
    %c0_27 = arith.constant 0 : index
    %c0_28 = arith.constant 0 : index
    %26 = vector.load %arg10[%c0_27, %c0_28] : memref<1x16xf32, #tpu.memory_space<vmem>>, vector<1x16xf32>
    tpu.vector_store %arg10[%c0_27, %c0_28], %25 {strides = array<i32>} : memref<1x16xf32, #tpu.memory_space<vmem>>, vector<1x16xf32>,
    return
  }
  func.func @transform_0(%arg0: i32) -> (i32, i32) {
    %c0_i32 = arith.constant 0 : i32
    %c0_i32_0 = arith.constant 0 : i32
    return %arg0, %c0_i32 : i32, i32
  }
  func.func @transform_1(%arg0: i32) -> (i32, i32) {
    %c0_i32 = arith.constant 0 : i32
    %c0_i32_0 = arith.constant 0 : i32
    return %arg0, %c0_i32 : i32, i32
  }
  func.func @transform_2(%arg0: i32) -> (i32, i32) {
    %c0_i32 = arith.constant 0 : i32
    %c0_i32_0 = arith.constant 0 : i32
    return %arg0, %c0_i32 : i32, i32
  }
  func.func @transform_3(%arg0: i32) -> (i32, i32) {
    %c0_i32 = arith.constant 0 : i32
    %c0_i32_0 = arith.constant 0 : i32
    %c0_i32_1 = arith.constant 0 : i32
    return %c0_i32, %c0_i32_0 : i32, i32
  }
  func.func @transform_4(%arg0: i32) -> (i32, i32) {
    %c0_i32 = arith.constant 0 : i32
    %c0_i32_0 = arith.constant 0 : i32
    %c0_i32_1 = arith.constant 0 : i32
    return %c0_i32, %c0_i32_0 : i32, i32
  }
  func.func @transform_5(%arg0: i32) -> (i32, i32) {
    %c0_i32 = arith.constant 0 : i32
    %c0_i32_0 = arith.constant 0 : i32
    %c0_i32_1 = arith.constant 0 : i32
    return %c0_i32, %c0_i32_0 : i32, i32
  }
  func.func @transform_6(%arg0: i32) -> (i32, i32) {
    %c0_i32 = arith.constant 0 : i32
    %c0_i32_0 = arith.constant 0 : i32
    %c0_i32_1 = arith.constant 0 : i32
    return %c0_i32, %c0_i32_0 : i32, i32
  }
  func.func @transform_7(%arg0: i32) -> (i32, i32) {
    %c0_i32 = arith.constant 0 : i32
    %c0_i32_0 = arith.constant 0 : i32
    %c0_i32_1 = arith.constant 0 : i32
    return %c0_i32, %c0_i32_0 : i32, i32
  }
  func.func @transform_8(%arg0: i32) -> (i32, i32) {
    %c0_i32 = arith.constant 0 : i32
    %c0_i32_0 = arith.constant 0 : i32
    %c0_i32_1 = arith.constant 0 : i32
    return %c0_i32, %c0_i32_0 : i32, i32
  }
  func.func @transform_9(%arg0: i32) -> (i32, i32) {
    %c0_i32 = arith.constant 0 : i32
    %c0_i32_0 = arith.constant 0 : i32
    return %c0_i32, %arg0 : i32, i32
  }
}

</mosaic_0001>

<llo_original>
// kernel: tpu_custom_call.1
$region0: #{tpu_custom_call.1}
  #allocation0 [shape = 'u32[]', space=smem, size = 0x4, offset = 0x4, fixed_abs, tag = 'smem constant byte address 0x4 - core index']
  #allocation1 [shape = 'u32[72,128]{1,0:T(1,128)}', space=vmem, size = 0x9000, scoped, tag = 'internal scratch']
  #allocation2 [shape = 'f32[16,32]{1,0:T(8,128)}', space=vmem, size = 0x2000, scoped, tag = 'scratch operand']
  #allocation3 [shape = 'f32[1,1]{1,0:T(1,128)S(1)}', space=vmem, size = 0x200, scoped, tag = 'scoped memory for tpu_custom_call.1']
  %s0 = inlined_call_operand.vmem [shape: f32[16,12], index: 0, kind: input, shape index: {}]
  %s1 = inlined_call_operand.vmem [shape: f32[16,4], index: 1, kind: input, shape index: {}]
  %s2 = inlined_call_operand.hbm [shape: f32[16,16], index: 2, kind: input, shape index: {}]
  %s3 = inlined_call_operand.hbm [shape: f32[32,128], index: 3, kind: input, shape index: {}]
  %s4 = inlined_call_operand.vmem [shape: f32[1,128], index: 4, kind: input, shape index: {}]
  %s5 = inlined_call_operand.hbm [shape: f32[128,128], index: 5, kind: input, shape index: {}]
  %s6 = inlined_call_operand.vmem [shape: f32[1,128], index: 6, kind: input, shape index: {}]
  %s7 = inlined_call_operand.vmem [shape: f32[1,128], index: 7, kind: input, shape index: {}]
  %s8 = inlined_call_operand.<no memory space> [shape: f32[1,1], index: 8, kind: input, shape index: {}]
  %s9 = inlined_call_operand.hbm [shape: f32[1,16], index: 9, kind: output, shape index: {}]
  %s10 = sld [smem:[#allocation0]]
  $region58: #{tpu_custom_call.1} parent=0
    _
  %s12 = ssub.s32 1, %s10
  %s13 = scalar_select 0, %s12, %s10
  %v14 = vstv %s8
  %15 = vst [vmem:[#allocation3] sm:$0x1] %v14
  $region1: #{tpu_custom_call.1} parent=0
    #allocation4 [shape = 'u8[8192]{0}', space=vmem, size = 0x2000, scoped, tag = 'input window, operand 2, single buffered']
    #allocation5 [shape = 's32[1]{0}', space=sflag, size = 0x4, scoped, tag = 'scoped memory for tpu_custom_call.1']
    #allocation6 [shape = 's32[1]{0}', space=sflag, size = 0x4, scoped, tag = 'scoped memory for tpu_custom_call.1']
    #allocation7 [shape = 'u8[16384]{0}', space=vmem, size = 0x4000, scoped, tag = 'input window, operand 3, single buffered']
    #allocation8 [shape = 's32[1]{0}', space=sflag, size = 0x4, scoped, tag = 'scoped memory for tpu_custom_call.1']
    #allocation9 [shape = 'u8[65536]{0}', space=vmem, size = 0x10000, scoped, tag = 'input window, operand 5, single buffered']
    #allocation10 [shape = 'u8[512]{0}', space=vmem, size = 0x400, scoped, tag = 'output window, operand 0, single buffered']
    %16 = vsyncpa [#allocation5], 0
    %17 = vsyncpa [#allocation8], 0
    %18 = vsyncpa [#allocation6], 0
    // Predicated region
    $region2: #{tpu_custom_call.1} parent=1 // pred_check
      _
    $region3: #{tpu_custom_call.1} parent=1 // pred_check_branch
      %20 = sbr.rel (0) target = $region5
    $region4: #{tpu_custom_call.1} parent=1 // pred_region
      _
    $region5: #{tpu_custom_call.1} parent=1 // pred_fallthru
      _
    // Predicated region
    $region6: #{tpu_custom_call.1} parent=1 // pred_check
      _
    $region7: #{tpu_custom_call.1} parent=1 // pred_check_branch
      %22 = sbr.rel (0) target = $region9
    $region8: #{tpu_custom_call.1} parent=1 // pred_region
      _
    $region9: #{tpu_custom_call.1} parent=1 // pred_fallthru
      _
    // Predicated region
    $region10: #{tpu_custom_call.1} parent=1 // pred_check
      _
    $region11: #{tpu_custom_call.1} parent=1 // pred_check_branch
      %24 = sbr.rel (0) target = $region13
    $region12: #{tpu_custom_call.1} parent=1 // pred_region
      %26 = vsyncadd [#allocation5], 0
      %s27 = sshll.u32 %s2, 4
      %s28 = int_to_ptr.hbm [resolvable:$true] %s27
      %s29 = sshll.u32 [#allocation4], 4
      %s30 = int_to_ptr.vmem [resolvable:$true] %s29
      %35 = dma.hbm_to_vmem [thread:$0]  %s28, 256, %s30, [#allocation5], 128, 128, 8
    $region13: #{tpu_custom_call.1} parent=1 // pred_fallthru
      _
    // Predicated region
    $region14: #{tpu_custom_call.1} parent=1 // pred_check
      _
    $region15: #{tpu_custom_call.1} parent=1 // pred_check_branch
      %37 = sbr.rel (0) target = $region17
    $region16: #{tpu_custom_call.1} parent=1 // pred_region
      %39 = vsyncadd [#allocation8], 0
      %s40 = sshll.u32 %s3, 4
      %s41 = int_to_ptr.hbm [resolvable:$true] %s40
      %s42 = sshll.u32 [#allocation7], 4
      %s43 = int_to_ptr.vmem [resolvable:$true] %s42
      %48 = dma.hbm_to_vmem [thread:$0]  %s41, 512, %s43, [#allocation8], 128, 128, 8
    $region17: #{tpu_custom_call.1} parent=1 // pred_fallthru
      _
    // Predicated region
    $region18: #{tpu_custom_call.1} parent=1 // pred_check
      _
    $region19: #{tpu_custom_call.1} parent=1 // pred_check_branch
      %50 = sbr.rel (0) target = $region21
    $region20: #{tpu_custom_call.1} parent=1 // pred_region
      _
    $region21: #{tpu_custom_call.1} parent=1 // pred_fallthru
      _
    // Predicated region
    $region22: #{tpu_custom_call.1} parent=1 // pred_check
      _
    $region23: #{tpu_custom_call.1} parent=1 // pred_check_branch
      %52 = sbr.rel (0) target = $region25
    $region24: #{tpu_custom_call.1} parent=1 // pred_region
      %54 = vsyncadd [#allocation8], 0
      %s55 = sshll.u32 %s5, 4
      %s56 = int_to_ptr.hbm [resolvable:$true] %s55
      %s57 = sshll.u32 [#allocation9], 4
      %s58 = int_to_ptr.vmem [resolvable:$true] %s57
      %63 = dma.hbm_to_vmem [thread:$0]  %s56, 2048, %s58, [#allocation8], 128, 128, 8
    $region25: #{tpu_custom_call.1} parent=1 // pred_fallthru
      _
    // Predicated region
    $region26: #{tpu_custom_call.1} parent=1 // pred_check
      _
    $region27: #{tpu_custom_call.1} parent=1 // pred_check_branch
      %65 = sbr.rel (0) target = $region29
    $region28: #{tpu_custom_call.1} parent=1 // pred_region
      _
    $region29: #{tpu_custom_call.1} parent=1 // pred_fallthru
      _
    // Predicated region
    $region30: #{tpu_custom_call.1} parent=1 // pred_check
      _
    $region31: #{tpu_custom_call.1} parent=1 // pred_check_branch
      %67 = sbr.rel (0) target = $region33
    $region32: #{tpu_custom_call.1} parent=1 // pred_region
      _
    $region33: #{tpu_custom_call.1} parent=1 // pred_fallthru
      _
    // Predicated region
    $region34: #{tpu_custom_call.1} parent=1 // pred_check
      _
    $region35: #{tpu_custom_call.1} parent=1 // pred_check_branch
      %69 = sbr.rel (0) target = $region37
    $region36: #{tpu_custom_call.1} parent=1 // pred_region
      _
    $region37: #{tpu_custom_call.1} parent=1 // pred_fallthru
      _
    // Predicated region
    $region38: #{tpu_custom_call.1} parent=1 // pred_check
      _
    $region39: #{tpu_custom_call.1} parent=1 // pred_check_branch
      %71 = sbr.rel (0) target = $region41
    $region40: #{tpu_custom_call.1} parent=1 // pred_region
      %73 = dma.done [#allocation5], 256
    $region41: #{tpu_custom_call.1} parent=1 // pred_fallthru
      _
    // Predicated region
    $region42: #{tpu_custom_call.1} parent=1 // pred_check
      _
    $region43: #{tpu_custom_call.1} parent=1 // pred_check_branch
      %75 = sbr.rel (0) target = $region45
    $region44: #{tpu_custom_call.1} parent=1 // pred_region
      %77 = dma.done [#allocation8], 512
    $region45: #{tpu_custom_call.1} parent=1 // pred_fallthru
      _
    // Predicated region
    $region46: #{tpu_custom_call.1} parent=1 // pred_check
      _
    $region47: #{tpu_custom_call.1} parent=1 // pred_check_branch
      %79 = sbr.rel (0) target = $region49
    $region48: #{tpu_custom_call.1} parent=1 // pred_region
      %81 = dma.done [#allocation8], 2048
    $region49: #{tpu_custom_call.1} parent=1 // pred_fallthru
      _
    %v82 = vld [vmem:[%s0] sm:$0xff]
    %v83 = vld [vmem:[%s0 + $0x8] sm:$0xff]
    %vm84 = vcmask 97280
    %85 = vst.msk [vmem:[#allocation2] sm:$0xff] %vm84, %v82
    %86 = vst.msk [vmem:[#allocation2 + $0x8] sm:$0xff] %vm84, %v83
    %v87 = vld [vmem:[%s1] sm:$0xff]
    %v88 = vld [vmem:[%s1 + $0x8] sm:$0xff]
    %91 = vrot.lane.b32.xlu0 %v87, 12
    %v92 = vpop.permute.xlu0 %91
    %93 = vrot.lane.b32.xlu0 %v88, 12
    %v94 = vpop.permute.xlu0 %93
    %vm97 = vcmask 130144
    %98 = vst.msk [vmem:[#allocation2] sm:$0xff] %vm97, %v92
    %99 = vst.msk [vmem:[#allocation2 + $0x8] sm:$0xff] %vm97, %v94
    %v100 = vld [vmem:[#allocation4] sm:$0xff]
    %v101 = vld [vmem:[#allocation4 + $0x8] sm:$0xff]
    %104 = vrot.lane.b32.xlu0 %v100, 16
    %v105 = vpop.permute.xlu0 %104
    %106 = vrot.lane.b32.xlu0 %v101, 16
    %v107 = vpop.permute.xlu0 %106
    %vm110 = vcmask 261248
    %111 = vst.msk [vmem:[#allocation2] sm:$0xff] %vm110, %v105
    %112 = vst.msk [vmem:[#allocation2 + $0x8] sm:$0xff] %vm110, %v107
    %v113 = vld [vmem:[#allocation2] sm:$0xff]
    %v114 = vld [vmem:[#allocation2 + $0x8] sm:$0xff]
    %v115 = vld [vmem:[#allocation7] sm:$0xff]
    %v116 = vld [vmem:[#allocation7 + $0x8] sm:$0xff]
    %v117 = vld [vmem:[#allocation7 + $0x10] sm:$0xff]
    %v118 = vld [vmem:[#allocation7 + $0x18] sm:$0xff]
    %v119 = vld [vmem:[%s4] sm:$0x1]
    %v121 = vperm.slane %v119, 0
    %vm123 = vcmask 261120
    %v125 = vsel %vm123, %v113, 0
    %v128 = vsel %vm123, %v114, 0
    %130 = vmatpush.msra.mxu0 0.0
    %131 = vmatpush.msra.mxu0 0.0
    %132 = vmatpush.msra.mxu0 0.0
    %133 = vmatpush.msra.mxu0 0.0
    %134 = vmatpush.msra.mxu0 0.0
    %135 = vmatpush.msra.mxu0 0.0
    %136 = vmatpush.msra.mxu0 0.0
    %137 = vmatpush.msra.mxu0 0.0
    %138 = vmatpush.msra.mxu0 0.0
    %139 = vmatpush.msra.mxu0 0.0
    %140 = vmatpush.msra.mxu0 0.0
    %141 = vmatpush.msra.mxu0 0.0
    %142 = vmatpush.msra.mxu0 %v118
    %143 = vmatpush.msra.mxu0 %v117
    %144 = vmatpush.msra.mxu0 %v116
    %145 = vmatpush.msra.mxu0 %v115
    %146 = vmatmul.f32.gmra.mxu0 %v125
    %v147 = vpop.f32.mrf.mxu0
    %v148 = vadd.f32 %v121, %v147
    %149 = vmatmul.f32.gmra.mxu0 %v128
    %v150 = vpop.f32.mrf.mxu0
    %v151 = vadd.f32 %v121, %v150
    %152 = vdwg.mxu0
    %v153 = vmax.f32 %v148, 0.0
    %v154 = vmax.f32 %v151, 0.0
    %v155 = vld [vmem:[#allocation9] sm:$0xff]
    %v156 = vld [vmem:[#allocation9 + $0x8] sm:$0xff]
    %v157 = vld [vmem:[#allocation9 + $0x10] sm:$0xff]
    %v158 = vld [vmem:[#allocation9 + $0x18] sm:$0xff]
    %v159 = vld [vmem:[#allocation9 + $0x20] sm:$0xff]
    %v160 = vld [vmem:[#allocation9 + $0x28] sm:$0xff]
    %v161 = vld [vmem:[#allocation9 + $0x30] sm:$0xff]
    %v162 = vld [vmem:[#allocation9 + $0x38] sm:$0xff]
    %v163 = vld [vmem:[#allocation9 + $0x40] sm:$0xff]
    %v164 = vld [vmem:[#allocation9 + $0x48] sm:$0xff]
    %v165 = vld [vmem:[#allocation9 + $0x50] sm:$0xff]
    %v166 = vld [vmem:[#allocation9 + $0x58] sm:$0xff]
    %v167 = vld [vmem:[#allocation9 + $0x60] sm:$0xff]
    %v168 = vld [vmem:[#allocation9 + $0x68] sm:$0xff]
    %v169 = vld [vmem:[#allocation9 + $0x70] sm:$0xff]
    %v170 = vld [vmem:[#allocation9 + $0x78] sm:$0xff]
    %v171 = vld [vmem:[%s6] sm:$0x1]
    %v173 = vperm.slane %v171, 0
    %175 = vmatpush.msra.mxu0 %v170
    %176 = vmatpush.msra.mxu0 %v169
    %177 = vmatpush.msra.mxu0 %v168
    %178 = vmatpush.msra.mxu0 %v167
    %179 = vmatpush.msra.mxu0 %v166
    %180 = vmatpush.msra.mxu0 %v165
    %181 = vmatpush.msra.mxu0 %v164
    %182 = vmatpush.msra.mxu0 %v163
    %183 = vmatpush.msra.mxu0 %v162
    %184 = vmatpush.msra.mxu0 %v161
    %185 = vmatpush.msra.mxu0 %v160
    %186 = vmatpush.msra.mxu0 %v159
    %187 = vmatpush.msra.mxu0 %v158
    %188 = vmatpush.msra.mxu0 %v157
    %189 = vmatpush.msra.mxu0 %v156
    %190 = vmatpush.msra.mxu0 %v155
    %191 = vmatmul.f32.gmra.mxu0 %v153
    %v192 = vpop.f32.mrf.mxu0
    %v193 = vadd.f32 %v173, %v192
    %194 = vmatmul.f32.gmra.mxu0 %v154
    %v195 = vpop.f32.mrf.mxu0
    %v196 = vadd.f32 %v173, %v195
    %197 = vdwg.mxu0
    %v198 = vmax.f32 %v193, 0.0
    %v199 = vmax.f32 %v196, 0.0
    %v200 = vld [vmem:[%s7] sm:$0x1]
    %v201 = vld [vmem:[#allocation3] sm:$0x1]
    %203 = vset.pattern.permute.xlu0 0
    %204 = vperm.xlu0 %203, %v201
    %v205 = vpop.permute.xlu0 %204
    %v207 = vperm.slane %v205, 0
    %208 = vmatpush.xpose.msra.mxu0 0.0
    %209 = vmatpush.xpose.msra.mxu0 0.0
    %210 = vmatpush.xpose.msra.mxu0 0.0
    %211 = vmatpush.xpose.msra.mxu0 0.0
    %212 = vmatpush.xpose.msra.mxu0 0.0
    %213 = vmatpush.xpose.msra.mxu0 0.0
    %214 = vmatpush.xpose.msra.mxu0 0.0
    %215 = vmatpush.xpose.msra.mxu0 0.0
    %216 = vmatpush.xpose.msra.mxu0 0.0
    %217 = vmatpush.xpose.msra.mxu0 0.0
    %218 = vmatpush.xpose.msra.mxu0 0.0
    %219 = vmatpush.xpose.msra.mxu0 0.0
    %220 = vmatpush.xpose.msra.mxu0 0.0
    %221 = vmatpush.xpose.msra.mxu0 0.0
    %222 = vmatpush.xpose.msra.mxu0 %v199
    %223 = vmatpush.xpose.msra.mxu0 %v198
    %224 = vmatmul.f32.gmra.mxu0 %v200
    %v225 = vpop.f32.mrf.mxu0
    %v226 = vadd.f32 %v207, %v225
    %227 = vdwg.mxu0
    %vm228 = vcmask 122880
    %229 = vst.msk [vmem:[#allocation10] sm:$0x1] %vm228, %v226
    // Predicated region
    $region50: #{tpu_custom_call.1} parent=1 // pred_check
      _
    $region51: #{tpu_custom_call.1} parent=1 // pred_check_branch
      %231 = sbr.rel (0) target = $region53
    $region52: #{tpu_custom_call.1} parent=1 // pred_region
      %233 = vsyncadd [#allocation6], 0
      %s235 = sshll.u32 [#allocation10], 4
      %s236 = int_to_ptr.vmem [resolvable:$true] %s235
      %s237 = sshll.u32 %s9, 4
      %s238 = int_to_ptr.hbm [resolvable:$true] %s237
      %240 = dma.vmem_to_hbm [thread:$0]  %s236, 16, %s238, [#allocation6]
    $region53: #{tpu_custom_call.1} parent=1 // pred_fallthru
      _
    // Predicated region
    $region54: #{tpu_custom_call.1} parent=1 // pred_check
      _
    $region55: #{tpu_custom_call.1} parent=1 // pred_check_branch
      %242 = sbr.rel (0) target = $region57
    $region56: #{tpu_custom_call.1} parent=1 // pred_region
      %244 = dma.done [#allocation6], 16
    $region57: #{tpu_custom_call.1} parent=1 // pred_fallthru
      _
    %245 = vsyncpa [#allocation5], 1
    %246 = vsyncpa [#allocation8], 1
    %247 = vsyncpa [#allocation6], 1

// kernel: tpu_custom_call.1
$region0: #{tpu_custom_call.1}
  #allocation0 [shape = 'u32[]', space=smem, size = 0x4, offset = 0x4, fixed_abs, tag = 'smem constant byte address 0x4 - core index']
  #allocation1 [shape = 'u32[72,128]{1,0:T(1,128)}', space=vmem, size = 0x9000, scoped, tag = 'internal scratch']
  #allocation2 [shape = 'f32[16,32]{1,0:T(8,128)}', space=vmem, size = 0x2000, scoped, tag = 'scratch operand']
  #allocation3 [shape = 'f32[1,1]{1,0:T(1,128)S(1)}', space=vmem, size = 0x200, scoped, tag = 'scoped memory for tpu_custom_call.1']
  %s0 = inlined_call_operand.vmem [shape: f32[16,12], index: 0, kind: input, shape index: {}]
  %s1 = inlined_call_operand.vmem [shape: f32[16,4], index: 1, kind: input, shape index: {}]
  %s2 = inlined_call_operand.hbm [shape: f32[16,16], index: 2, kind: input, shape index: {}]
  %s3 = inlined_call_operand.hbm [shape: f32[32,128], index: 3, kind: input, shape index: {}]
  %s4 = inlined_call_operand.vmem [shape: f32[1,128], index: 4, kind: input, shape index: {}]
  %s5 = inlined_call_operand.hbm [shape: f32[128,128], index: 5, kind: input, shape index: {}]
  %s6 = inlined_call_operand.vmem [shape: f32[1,128], index: 6, kind: input, shape index: {}]
  %s7 = inlined_call_operand.vmem [shape: f32[1,128], index: 7, kind: input, shape index: {}]
  %s8 = inlined_call_operand.<no memory space> [shape: f32[1,1], index: 8, kind: input, shape index: {}]
  %s9 = inlined_call_operand.hbm [shape: f32[1,16], index: 9, kind: output, shape index: {}]
  %s10 = sld [smem:[#allocation0]]
  $region58: #{tpu_custom_call.1} parent=0
    _
  %s12 = ssub.s32 1, %s10
  %s13 = scalar_select 0, %s12, %s10
  %v14 = vstv %s8
  %15 = vst [vmem:[#allocation3] sm:$0x1] %v14
  $region1: #{tpu_custom_call.1} parent=0
    #allocation4 [shape = 'u8[8192]{0}', space=vmem, size = 0x2000, scoped, tag = 'input window, operand 2, single buffered']
    #allocation5 [shape = 's32[1]{0}', space=sflag, size = 0x4, scoped, tag = 'scoped memory for tpu_custom_call.1']
    #allocation6 [shape = 's32[1]{0}', space=sflag, size = 0x4, scoped, tag = 'scoped memory for tpu_custom_call.1']
    #allocation7 [shape = 'u8[16384]{0}', space=vmem, size = 0x4000, scoped, tag = 'input window, operand 3, single buffered']
    #allocation8 [shape = 's32[1]{0}', space=sflag, size = 0x4, scoped, tag = 'scoped memory for tpu_custom_call.1']
    #allocation9 [shape = 'u8[65536]{0}', space=vmem, size = 0x10000, scoped, tag = 'input window, operand 5, single buffered']
    #allocation10 [shape = 'u8[512]{0}', space=vmem, size = 0x400, scoped, tag = 'output window, operand 0, single buffered']
    %16 = vsyncpa [#allocation5], 0
    %17 = vsyncpa [#allocation8], 0
    %18 = vsyncpa [#allocation6], 0
    // Predicated region
    $region2: #{tpu_custom_call.1} parent=1 // pred_check
      _
    $region3: #{tpu_custom_call.1} parent=1 // pred_check_branch
      %20 = sbr.rel (0) target = $region5
    $region4: #{tpu_custom_call.1} parent=1 // pred_region
      _
    $region5: #{tpu_custom_call.1} parent=1 // pred_fallthru
      _
    // Predicated region
    $region6: #{tpu_custom_call.1} parent=1 // pred_check
      _
    $region7: #{tpu_custom_call.1} parent=1 // pred_check_branch
      %22 = sbr.rel (0) target = $region9
    $region8: #{tpu_custom_call.1} parent=1 // pred_region
      _
    $region9: #{tpu_custom_call.1} parent=1 // pred_fallthru
      _
    // Predicated region
    $region10: #{tpu_custom_call.1} parent=1 // pred_check
      _
    $region11: #{tpu_custom_call.1} parent=1 // pred_check_branch
      %24 = sbr.rel (0) target = $region13
    $region12: #{tpu_custom_call.1} parent=1 // pred_region
      %26 = vsyncadd [#allocation5], 0
      %s27 = sshll.u32 %s2, 4
      %s28 = int_to_ptr.hbm [resolvable:$true] %s27
      %s29 = sshll.u32 [#allocation4], 4
      %s30 = int_to_ptr.vmem [resolvable:$true] %s29
      %35 = dma.hbm_to_vmem [thread:$0]  %s28, 256, %s30, [#allocation5], 128, 128, 8
    $region13: #{tpu_custom_call.1} parent=1 // pred_fallthru
      _
    // Predicated region
    $region14: #{tpu_custom_call.1} parent=1 // pred_check
      _
    $region15: #{tpu_custom_call.1} parent=1 // pred_check_branch
      %37 = sbr.rel (0) target = $region17
    $region16: #{tpu_custom_call.1} parent=1 // pred_region
      %39 = vsyncadd [#allocation8], 0
      %s40 = sshll.u32 %s3, 4
      %s41 = int_to_ptr.hbm [resolvable:$true] %s40
      %s42 = sshll.u32 [#allocation7], 4
      %s43 = int_to_ptr.vmem [resolvable:$true] %s42
      %48 = dma.hbm_to_vmem [thread:$0]  %s41, 512, %s43, [#allocation8], 128, 128, 8
    $region17: #{tpu_custom_call.1} parent=1 // pred_fallthru
      _
    // Predicated region
    $region18: #{tpu_custom_call.1} parent=1 // pred_check
      _
    $region19: #{tpu_custom_call.1} parent=1 // pred_check_branch
      %50 = sbr.rel (0) target = $region21
    $region20: #{tpu_custom_call.1} parent=1 // pred_region
      _
    $region21: #{tpu_custom_call.1} parent=1 // pred_fallthru
      _
    // Predicated region
    $region22: #{tpu_custom_call.1} parent=1 // pred_check
      _
    $region23: #{tpu_custom_call.1} parent=1 // pred_check_branch
      %52 = sbr.rel (0) target = $region25
    $region24: #{tpu_custom_call.1} parent=1 // pred_region
      %54 = vsyncadd [#allocation8], 0
      %s55 = sshll.u32 %s5, 4
      %s56 = int_to_ptr.hbm [resolvable:$true] %s55
      %s57 = sshll.u32 [#allocation9], 4
      %s58 = int_to_ptr.vmem [resolvable:$true] %s57
      %63 = dma.hbm_to_vmem [thread:$0]  %s56, 2048, %s58, [#allocation8], 128, 128, 8
    $region25: #{tpu_custom_call.1} parent=1 // pred_fallthru
      _
    // Predicated region
    $region26: #{tpu_custom_call.1} parent=1 // pred_check
      _
    $region27: #{tpu_custom_call.1} parent=1 // pred_check_branch
      %65 = sbr.rel (0) target = $region29
    $region28: #{tpu_custom_call.1} parent=1 // pred_region
      _
    $region29: #{tpu_custom_call.1} parent=1 // pred_fallthru
      _
    // Predicated region
    $region30: #{tpu_custom_call.1} parent=1 // pred_check
      _
    $region31: #{tpu_custom_call.1} parent=1 // pred_check_branch
      %67 = sbr.rel (0) target = $region33
    $region32: #{tpu_custom_call.1} parent=1 // pred_region
      _
    $region33: #{tpu_custom_call.1} parent=1 // pred_fallthru
      _
    // Predicated region
    $region34: #{tpu_custom_call.1} parent=1 // pred_check
      _
    $region35: #{tpu_custom_call.1} parent=1 // pred_check_branch
      %69 = sbr.rel (0) target = $region37
    $region36: #{tpu_custom_call.1} parent=1 // pred_region
      _
    $region37: #{tpu_custom_call.1} parent=1 // pred_fallthru
      _
    // Predicated region
    $region38: #{tpu_custom_call.1} parent=1 // pred_check
      _
    $region39: #{tpu_custom_call.1} parent=1 // pred_check_branch
      %71 = sbr.rel (0) target = $region41
    $region40: #{tpu_custom_call.1} parent=1 // pred_region
      %73 = dma.done [#allocation5], 256
    $region41: #{tpu_custom_call.1} parent=1 // pred_fallthru
      _
    // Predicated region
    $region42: #{tpu_custom_call.1} parent=1 // pred_check
      _
    $region43: #{tpu_custom_call.1} parent=1 // pred_check_branch
      %75 = sbr.rel (0) target = $region45
    $region44: #{tpu_custom_call.1} parent=1 // pred_region
      %77 = dma.done [#allocation8], 512
    $region45: #{tpu_custom_call.1} parent=1 // pred_fallthru
      _
    // Predicated region
    $region46: #{tpu_custom_call.1} parent=1 // pred_check
      _
    $region47: #{tpu_custom_call.1} parent=1 // pred_check_branch
      %79 = sbr.rel (0) target = $region49
    $region48: #{tpu_custom_call.1} parent=1 // pred_region
      %81 = dma.done [#allocation8], 2048
    $region49: #{tpu_custom_call.1} parent=1 // pred_fallthru
      _
    %v82 = vld [vmem:[%s0] sm:$0xff]
    %v83 = vld [vmem:[%s0 + $0x8] sm:$0xff]
    %vm84 = vcmask 97280
    %85 = vst.msk [vmem:[#allocation2] sm:$0xff] %vm84, %v82
    %86 = vst.msk [vmem:[#allocation2 + $0x8] sm:$0xff] %vm84, %v83
    %v87 = vld [vmem:[%s1] sm:$0xff]
    %v88 = vld [vmem:[%s1 + $0x8] sm:$0xff]
    %91 = vrot.lane.b32.xlu0 %v87, 12
    %v92 = vpop.permute.xlu0 %91
    %93 = vrot.lane.b32.xlu0 %v88, 12
    %v94 = vpop.permute.xlu0 %93
    %vm97 = vcmask 130144
    %98 = vst.msk [vmem:[#allocation2] sm:$0xff] %vm97, %v92
    %99 = vst.msk [vmem:[#allocation2 + $0x8] sm:$0xff] %vm97, %v94
    %v100 = vld [vmem:[#allocation4] sm:$0xff]
    %v101 = vld [vmem:[#allocation4 + $0x8] sm:$0xff]
    %104 = vrot.lane.b32.xlu0 %v100, 16
    %v105 = vpop.permute.xlu0 %104
    %106 = vrot.lane.b32.xlu0 %v101, 16
    %v107 = vpop.permute.xlu0 %106
    %vm110 = vcmask 261248
    %111 = vst.msk [vmem:[#allocation2] sm:$0xff] %vm110, %v105
    %112 = vst.msk [vmem:[#allocation2 + $0x8] sm:$0xff] %vm110, %v107
    %v113 = vld [vmem:[#allocation2] sm:$0xff]
    %v114 = vld [vmem:[#allocation2 + $0x8] sm:$0xff]
    %v115 = vld [vmem:[#allocation7] sm:$0xff]
    %v116 = vld [vmem:[#allocation7 + $0x8] sm:$0xff]
    %v117 = vld [vmem:[#allocation7 + $0x10] sm:$0xff]
    %v118 = vld [vmem:[#allocation7 + $0x18] sm:$0xff]
    %v119 = vld [vmem:[%s4] sm:$0x1]
    %v121 = vperm.slane %v119, 0
    %vm123 = vcmask 261120
    %v125 = vsel %vm123, %v113, 0
    %v128 = vsel %vm123, %v114, 0
    %130 = vmatpush.msra.mxu0 0.0
    %131 = vmatpush.msra.mxu0 0.0
    %132 = vmatpush.msra.mxu0 0.0
    %133 = vmatpush.msra.mxu0 0.0
    %134 = vmatpush.msra.mxu0 0.0
    %135 = vmatpush.msra.mxu0 0.0
    %136 = vmatpush.msra.mxu0 0.0
    %137 = vmatpush.msra.mxu0 0.0
    %138 = vmatpush.msra.mxu0 0.0
    %139 = vmatpush.msra.mxu0 0.0
    %140 = vmatpush.msra.mxu0 0.0
    %141 = vmatpush.msra.mxu0 0.0
    %142 = vmatpush.msra.mxu0 %v118
    %143 = vmatpush.msra.mxu0 %v117
    %144 = vmatpush.msra.mxu0 %v116
    %145 = vmatpush.msra.mxu0 %v115
    %146 = vmatmul.f32.gmra.mxu0 %v125
    %v147 = vpop.f32.mrf.mxu0
    %v148 = vadd.f32 %v121, %v147
    %149 = vmatmul.f32.gmra.mxu0 %v128
    %v150 = vpop.f32.mrf.mxu0
    %v151 = vadd.f32 %v121, %v150
    %152 = vdwg.mxu0
    %v153 = vmax.f32 %v148, 0.0
    %v154 = vmax.f32 %v151, 0.0
    %v155 = vld [vmem:[#allocation9] sm:$0xff]
    %v156 = vld [vmem:[#allocation9 + $0x8] sm:$0xff]
    %v157 = vld [vmem:[#allocation9 + $0x10] sm:$0xff]
    %v158 = vld [vmem:[#allocation9 + $0x18] sm:$0xff]
    %v159 = vld [vmem:[#allocation9 + $0x20] sm:$0xff]
    %v160 = vld [vmem:[#allocation9 + $0x28] sm:$0xff]
    %v161 = vld [vmem:[#allocation9 + $0x30] sm:$0xff]
    %v162 = vld [vmem:[#allocation9 + $0x38] sm:$0xff]
    %v163 = vld [vmem:[#allocation9 + $0x40] sm:$0xff]
    %v164 = vld [vmem:[#allocation9 + $0x48] sm:$0xff]
    %v165 = vld [vmem:[#allocation9 + $0x50] sm:$0xff]
    %v166 = vld [vmem:[#allocation9 + $0x58] sm:$0xff]
    %v167 = vld [vmem:[#allocation9 + $0x60] sm:$0xff]
    %v168 = vld [vmem:[#allocation9 + $0x68] sm:$0xff]
    %v169 = vld [vmem:[#allocation9 + $0x70] sm:$0xff]
    %v170 = vld [vmem:[#allocation9 + $0x78] sm:$0xff]
    %v171 = vld [vmem:[%s6] sm:$0x1]
    %v173 = vperm.slane %v171, 0
    %175 = vmatpush.msra.mxu0 %v170
    %176 = vmatpush.msra.mxu0 %v169
    %177 = vmatpush.msra.mxu0 %v168
    %178 = vmatpush.msra.mxu0 %v167
    %179 = vmatpush.msra.mxu0 %v166
    %180 = vmatpush.msra.mxu0 %v165
    %181 = vmatpush.msra.mxu0 %v164
    %182 = vmatpush.msra.mxu0 %v163
    %183 = vmatpush.msra.mxu0 %v162
    %184 = vmatpush.msra.mxu0 %v161
    %185 = vmatpush.msra.mxu0 %v160
    %186 = vmatpush.msra.mxu0 %v159
    %187 = vmatpush.msra.mxu0 %v158
    %188 = vmatpush.msra.mxu0 %v157
    %189 = vmatpush.msra.mxu0 %v156
    %190 = vmatpush.msra.mxu0 %v155
    %191 = vmatmul.f32.gmra.mxu0 %v153
    %v192 = vpop.f32.mrf.mxu0
    %v193 = vadd.f32 %v173, %v192
    %194 = vmatmul.f32.gmra.mxu0 %v154
    %v195 = vpop.f32.mrf.mxu0
    %v196 = vadd.f32 %v173, %v195
    %197 = vdwg.mxu0
    %v198 = vmax.f32 %v193, 0.0
    %v199 = vmax.f32 %v196, 0.0
    %v200 = vld [vmem:[%s7] sm:$0x1]
    %v201 = vld [vmem:[#allocation3] sm:$0x1]
    %203 = vset.pattern.permute.xlu0 0
    %204 = vperm.xlu0 %203, %v201
    %v205 = vpop.permute.xlu0 %204
    %v207 = vperm.slane %v205, 0
    %208 = vmatpush.xpose.msra.mxu0 0.0
    %209 = vmatpush.xpose.msra.mxu0 0.0
    %210 = vmatpush.xpose.msra.mxu0 0.0
    %211 = vmatpush.xpose.msra.mxu0 0.0
    %212 = vmatpush.xpose.msra.mxu0 0.0
    %213 = vmatpush.xpose.msra.mxu0 0.0
    %214 = vmatpush.xpose.msra.mxu0 0.0
    %215 = vmatpush.xpose.msra.mxu0 0.0
    %216 = vmatpush.xpose.msra.mxu0 0.0
    %217 = vmatpush.xpose.msra.mxu0 0.0
    %218 = vmatpush.xpose.msra.mxu0 0.0
    %219 = vmatpush.xpose.msra.mxu0 0.0
    %220 = vmatpush.xpose.msra.mxu0 0.0
    %221 = vmatpush.xpose.msra.mxu0 0.0
    %222 = vmatpush.xpose.msra.mxu0 %v199
    %223 = vmatpush.xpose.msra.mxu0 %v198
    %224 = vmatmul.f32.gmra.mxu0 %v200
    %v225 = vpop.f32.mrf.mxu0
    %v226 = vadd.f32 %v207, %v225
    %227 = vdwg.mxu0
    %vm228 = vcmask 122880
    %229 = vst.msk [vmem:[#allocation10] sm:$0x1] %vm228, %v226
    // Predicated region
    $region50: #{tpu_custom_call.1} parent=1 // pred_check
      _
    $region51: #{tpu_custom_call.1} parent=1 // pred_check_branch
      %231 = sbr.rel (0) target = $region53
    $region52: #{tpu_custom_call.1} parent=1 // pred_region
      %233 = vsyncadd [#allocation6], 0
      %s235 = sshll.u32 [#allocation10], 4
      %s236 = int_to_ptr.vmem [resolvable:$true] %s235
      %s237 = sshll.u32 %s9, 4
      %s238 = int_to_ptr.hbm [resolvable:$true] %s237
      %240 = dma.vmem_to_hbm [thread:$0]  %s236, 16, %s238, [#allocation6]
    $region53: #{tpu_custom_call.1} parent=1 // pred_fallthru
      _
    // Predicated region
    $region54: #{tpu_custom_call.1} parent=1 // pred_check
      _
    $region55: #{tpu_custom_call.1} parent=1 // pred_check_branch
      %242 = sbr.rel (0) target = $region57
    $region56: #{tpu_custom_call.1} parent=1 // pred_region
      %244 = dma.done [#allocation6], 16
    $region57: #{tpu_custom_call.1} parent=1 // pred_fallthru
      _
    %245 = vsyncpa [#allocation5], 1
    %246 = vsyncpa [#allocation8], 1
    %247 = vsyncpa [#allocation6], 1

</llo_original>
